<compile_context>
chip_gen: v7x
topology: tpu7x:2x2x1
jax: 0.10.0
libtpu: 0.0.40
codegen_flags: <defaults>
</compile_context>

<pallas_src>
import math

import jax
import jax.numpy as jnp
from jax.experimental import pallas as pl
from jax.experimental.pallas import tpu as pltpu


def _round_up(x, m):
    return ((x + m - 1) // m) * m


def _pick_k_tile(h):
    # Largest convenient K-tile that divides H; full H for small hidden sizes.
    for cand in (512, 256, 128):
        if h % cand == 0 and h > cand:
            return cand
    return h


def _head_kernel(x1_ref, x2_ref, w1a_ref, w1b_ref, b1_ref, w2_ref, b2_ref,
                 o_ref, acc_ref):
    # Grid: (batch_tile i, k_tile k).  acc_ref: [TB, H] f32 accumulator.
    k = pl.program_id(1)

    @pl.when(k == 0)
    def _():
        acc_ref[...] = jnp.zeros_like(acc_ref)

    # dense: x1 @ W1[:H] + x2 @ W1[H:], K-tiled, f32 accumulation on the MXU.
    acc_ref[...] += (
        jnp.dot(x1_ref[...], w1a_ref[...], preferred_element_type=jnp.float32)
        + jnp.dot(x2_ref[...], w1b_ref[...], preferred_element_type=jnp.float32)
    )

    @pl.when(k == pl.num_programs(1) - 1)
    def _():
        h = acc_ref[...] + b1_ref[...]                      # bias in f32
        # exact (erf) GELU in f32, matching torch.nn.functional.gelu default
        inv_sqrt2 = jnp.float32(1.0 / math.sqrt(2.0))
        h = 0.5 * h * (1.0 + jax.lax.erf(h * inv_sqrt2))
        # out_proj: lane-dense (Lp = multiple of 128) output
        out = jnp.dot(h.astype(w2_ref.dtype), w2_ref[...],
                      preferred_element_type=jnp.float32) + b2_ref[...]
        o_ref[...] = out.astype(o_ref.dtype)


def electra_relation_head(features, loc1, loc2, params, num_labels,
                          compute_dtype=jnp.float32):
    """features: [B, S, H]; loc1, loc2: [B] int32; params from init_params.

    compute_dtype: pass jnp.bfloat16 on v6e/v7x to halve weight HBM traffic
    (biases, accumulation and GELU stay f32).
    """
    B, S, H = features.shape
    w1a = params["dense_w1"]      # [H, H]   (W1 rows for x1)
    w1b = params["dense_w2"]      # [H, H]   (W1 rows for x2)
    b1 = params["dense_b"]        # [1, H]
    w2 = params["out_proj_w"]     # [H, Lp]  lane-padded (Lp multiple of 128)
    b2 = params["out_proj_b"]     # [1, Lp]
    Lp = w2.shape[1]

    # Token gather (glue).  Dropout (inference) == identity.
    batch_idx = jnp.arange(B)
    x1 = features[batch_idx, loc1, :]            # [B, H]
    x2 = features[batch_idx, loc2, :]            # [B, H]

    # Pad batch to a sublane multiple and to the batch tile.
    Bp = _round_up(B, 8)
    TB = min(Bp, 128)
    Bp = _round_up(Bp, TB)
    if Bp != B:
        pad = ((0, Bp - B), (0, 0))
        x1 = jnp.pad(x1, pad)
        x2 = jnp.pad(x2, pad)

    # Optional bf16 matmul inputs (accumulation stays f32 in the kernel).
    x1 = x1.astype(compute_dtype)
    x2 = x2.astype(compute_dtype)
    w1a = w1a.astype(compute_dtype)
    w1b = w1b.astype(compute_dtype)
    w2 = w2.astype(compute_dtype)
    b1 = b1.astype(jnp.float32)
    b2 = b2.astype(jnp.float32)

    tk = _pick_k_tile(H)
    nb = Bp // TB
    nk = H // tk

    bpe = jnp.dtype(compute_dtype).itemsize
    # Rough VMEM footprint (double-buffered inputs/outputs + f32 accumulator).
    needed = 2 * bpe * (2 * TB * tk + 2 * tk * H + H * Lp) \
        + 2 * 4 * (H + Lp + TB * Lp) + 4 * TB * H
    vmem_limit = int(min(128 * 1024 * 1024, max(32 * 1024 * 1024, 2 * needed)))

    cost = pl.CostEstimate(
        flops=2 * Bp * (2 * H) * H + 2 * Bp * H * Lp,
        transcendentals=Bp * H,
        bytes_accessed=bpe * (2 * Bp * H + 2 * H * H + H * Lp)
        + 4 * (H + Lp + Bp * Lp),
    )

    grid_spec = pltpu.PrefetchScalarGridSpec(
        num_scalar_prefetch=0,
        grid=(nb, nk),
        in_specs=[
            pl.BlockSpec((TB, tk), lambda i, k: (i, k)),     # x1
            pl.BlockSpec((TB, tk), lambda i, k: (i, k)),     # x2
            pl.BlockSpec((tk, H), lambda i, k: (k, 0)),      # W1 (x1 half), K-tiled
            pl.BlockSpec((tk, H), lambda i, k: (k, 0)),      # W1 (x2 half), K-tiled
            pl.BlockSpec((1, H), lambda i, k: (0, 0)),       # dense bias (resident)
            pl.BlockSpec((H, Lp), lambda i, k: (0, 0)),      # out_proj W (resident)
            pl.BlockSpec((1, Lp), lambda i, k: (0, 0)),      # out_proj b (resident)
        ],
        out_specs=pl.BlockSpec((TB, Lp), lambda i, k: (i, 0)),
        scratch_shapes=[pltpu.VMEM((TB, H), jnp.float32)],
    )

    out_padded = pl.pallas_call(
        _head_kernel,
        out_shape=jax.ShapeDtypeStruct((Bp, Lp), features.dtype),
        grid_spec=grid_spec,
        compiler_params=pltpu.CompilerParams(
            dimension_semantics=("parallel", "arbitrary"),
            vmem_limit_bytes=vmem_limit,
        ),
        cost_estimate=cost,
    )(x1, x2, w1a, w1b, b1, w2, b2)

    # Drop batch padding and zero-padded logit lanes.
    return out_padded[:B, :num_labels]


def init_params(key, hidden_size, num_labels, dtype=jnp.float32):
    """Deterministic synthetic init matching nn.Linear shapes.

    Stored layout (kernel-friendly):
      dense_w1 / dense_w2 : [H, H]     (the two halves of the [2H, H] dense W)
      dense_b             : [1, H]
      out_proj_w          : [H, Lp]    zero-padded to Lp = round_up(L, 128)
      out_proj_b          : [1, Lp]    zero-padded
    """
    k1, k2, k3, k4 = jax.random.split(key, 4)
    in1 = hidden_size * 2
    bound1 = 1.0 / math.sqrt(in1)
    bound2 = 1.0 / math.sqrt(hidden_size)
    lp = _round_up(num_labels, 128)

    dense_w = jax.random.uniform(k1, (in1, hidden_size), dtype,
                                 minval=-bound1, maxval=bound1)
    out_w = jax.random.uniform(k3, (hidden_size, num_labels), dtype,
                               minval=-bound2, maxval=bound2)
    out_b = jax.random.uniform(k4, (1, num_labels), dtype,
                               minval=-bound2, maxval=bound2)
    return {
        "dense_w1": dense_w[:hidden_size],
        "dense_w2": dense_w[hidden_size:],
        "dense_b": jax.random.uniform(k2, (1, hidden_size), dtype,
                                      minval=-bound1, maxval=bound1),
        "out_proj_w": jnp.pad(out_w, ((0, 0), (0, lp - num_labels))),
        "out_proj_b": jnp.pad(out_b, ((0, 0), (0, lp - num_labels))),
    }


def _reference(features, loc1, loc2, params, num_labels):
    """Pure-JAX reference for correctness check."""
    B = features.shape[0]
    bi = jnp.arange(B)
    x1 = features[bi, loc1, :]
    x2 = features[bi, loc2, :]
    h = x1 @ params["dense_w1"] + x2 @ params["dense_w2"] + params["dense_b"]
    h = jax.nn.gelu(h, approximate=False)
    out = h @ params["out_proj_w"] + params["out_proj_b"]
    return out[:, :num_labels]


if __name__ == "__main__":
    B, S, H, L = 4, 16, 32, 8

    key = jax.random.PRNGKey(0)
    k_feat, k_loc1, k_loc2, k_params = jax.random.split(key, 4)

    features = jax.random.normal(k_feat, (B, S, H), dtype=jnp.float32)
    loc1 = jax.random.randint(k_loc1, (B,), 0, S, dtype=jnp.int32)
    loc2 = jax.random.randint(k_loc2, (B,), 0, S, dtype=jnp.int32)
    params = init_params(k_params, H, L)

    out = electra_relation_head(features, loc1, loc2, params, num_labels=L)
    out = jax.block_until_ready(out)

    ref = _reference(features, loc1, loc2, params, L)
    assert out.shape == (B, L)
    assert jnp.allclose(out, ref, atol=1e-5, rtol=1e-5)

    print("KERNEL_OK")
</pallas_src>

<mosaic_0001>
module attributes {stable_mosaic.version = 11 : i64} {
  func.func @_head_kernel(%arg0: i32, %arg1: i32, %arg2: memref<8x32xf32, #tpu.memory_space<vmem>>, %arg3: memref<8x32xf32, #tpu.memory_space<vmem>>, %arg4: memref<32x32xf32, #tpu.memory_space<vmem>>, %arg5: memref<32x32xf32, #tpu.memory_space<vmem>>, %arg6: memref<1x32xf32, #tpu.memory_space<vmem>>, %arg7: memref<32x128xf32, #tpu.memory_space<vmem>>, %arg8: memref<1x128xf32, #tpu.memory_space<vmem>>, %arg9: memref<8x128xf32, #tpu.memory_space<vmem>>, %arg10: memref<8x32xf32, #tpu.memory_space<vmem>>) attributes {dimension_semantics = [#tpu.dimension_semantics<parallel>, #tpu.dimension_semantics<arbitrary>], iteration_bounds = array<i64: 1, 1>, scalar_prefetch = 0 : i64, scratch_operands = 1 : i64, tpu.core_type = #tpu.core_type<tc>, window_params = [{transform_indices = @transform_0, window_bounds = array<i64: 8, 32>}, {transform_indices = @transform_1, window_bounds = array<i64: 8, 32>}, {transform_indices = @transform_2, window_bounds = array<i64: 32, 32>}, {transform_indices = @transform_3, window_bounds = array<i64: 32, 32>}, {pipeline_mode = #tpu.pipeline_mode<synchronous>, transform_indices = @transform_4, window_bounds = array<i64: 1, 32>}, {pipeline_mode = #tpu.pipeline_mode<synchronous>, transform_indices = @transform_5, window_bounds = array<i64: 32, 128>}, {pipeline_mode = #tpu.pipeline_mode<synchronous>, transform_indices = @transform_6, window_bounds = array<i64: 1, 128>}, {transform_indices = @transform_7, window_bounds = array<i64: 8, 128>}]} {
    %c0_i32 = arith.constant 0 : i32
    %0 = arith.cmpi eq, %arg1, %c0_i32 : i32
    %1 = arith.extui %0 : i1 to i32
    %c0_i32_0 = arith.constant 0 : i32
    %2 = arith.cmpi ne, %1, %c0_i32_0 : i32
    scf.if %2 {
      %cst_15 = arith.constant 0.000000e+00 : f32
      %16 = vector.broadcast %cst_15 : f32 to vector<8x32xf32>
      %c0_16 = arith.constant 0 : index
      %c0_17 = arith.constant 0 : index
      %17 = vector.load %arg10[%c0_16, %c0_17] : memref<8x32xf32, #tpu.memory_space<vmem>>, vector<8x32xf32>
      tpu.vector_store %arg10[%c0_16, %c0_17], %16 {strides = array<i32>} : memref<8x32xf32, #tpu.memory_space<vmem>>, vector<8x32xf32>,
    } else {
    }
    %c0 = arith.constant 0 : index
    %c0_1 = arith.constant 0 : index
    %3 = vector.load %arg10[%c0, %c0_1] : memref<8x32xf32, #tpu.memory_space<vmem>>, vector<8x32xf32>
    %c0_2 = arith.constant 0 : index
    %c0_3 = arith.constant 0 : index
    %4 = vector.load %arg2[%c0_2, %c0_3] : memref<8x32xf32, #tpu.memory_space<vmem>>, vector<8x32xf32>
    %c0_4 = arith.constant 0 : index
    %c0_5 = arith.constant 0 : index
    %5 = vector.load %arg4[%c0_4, %c0_5] : memref<32x32xf32, #tpu.memory_space<vmem>>, vector<32x32xf32>
    %cst = arith.constant dense<0.000000e+00> : vector<8x32xf32>
    %6 = tpu.matmul %4, %5, %cst {dimension_numbers = #tpu.dot_dimension_numbers<[1], [0], [0], [1], [0, 0, 1, 1], [], []>} : vector<8x32xf32>, vector<32x32xf32>, vector<8x32xf32> -> vector<8x32xf32>
    %c0_6 = arith.constant 0 : index
    %c0_7 = arith.constant 0 : index
    %7 = vector.load %arg3[%c0_6, %c0_7] : memref<8x32xf32, #tpu.memory_space<vmem>>, vector<8x32xf32>
    %c0_8 = arith.constant 0 : index
    %c0_9 = arith.constant 0 : index
    %8 = vector.load %arg5[%c0_8, %c0_9] : memref<32x32xf32, #tpu.memory_space<vmem>>, vector<32x32xf32>
    %cst_10 = arith.constant dense<0.000000e+00> : vector<8x32xf32>
    %9 = tpu.matmul %7, %8, %cst_10 {dimension_numbers = #tpu.dot_dimension_numbers<[1], [0], [0], [1], [0, 0, 1, 1], [], []>} : vector<8x32xf32>, vector<32x32xf32>, vector<8x32xf32> -> vector<8x32xf32>
    %10 = arith.addf %6, %9 : vector<8x32xf32>
    %11 = arith.addf %3, %10 : vector<8x32xf32>
    %c0_11 = arith.constant 0 : index
    %c0_12 = arith.constant 0 : index
    %12 = vector.load %arg10[%c0_11, %c0_12] : memref<8x32xf32, #tpu.memory_space<vmem>>, vector<8x32xf32>
    tpu.vector_store %arg10[%c0_11, %c0_12], %11 {strides = array<i32>} : memref<8x32xf32, #tpu.memory_space<vmem>>, vector<8x32xf32>,
    %c0_i32_13 = arith.constant 0 : i32
    %13 = arith.cmpi eq, %arg1, %c0_i32_13 : i32
    %14 = arith.extui %13 : i1 to i32
    %c0_i32_14 = arith.constant 0 : i32
    %15 = arith.cmpi ne, %14, %c0_i32_14 : i32
    scf.if %15 {
      %c0_15 = arith.constant 0 : index
      %c0_16 = arith.constant 0 : index
      %16 = vector.load %arg10[%c0_15, %c0_16] : memref<8x32xf32, #tpu.memory_space<vmem>>, vector<8x32xf32>
      %c0_17 = arith.constant 0 : index
      %c0_18 = arith.constant 0 : index
      %17 = vector.load %arg6[%c0_17, %c0_18] : memref<1x32xf32, #tpu.memory_space<vmem>>, vector<1x32xf32>
      %18 = vector.broadcast %17 : vector<1x32xf32> to vector<8x32xf32>
      %19 = arith.addf %16, %18 : vector<8x32xf32>
      %cst_19 = arith.constant 5.000000e-01 : f32
      %20 = vector.broadcast %cst_19 : f32 to vector<8x32xf32>
      %21 = arith.mulf %20, %19 : vector<8x32xf32>
      %cst_20 = arith.constant 0.707106769 : f32
      %22 = vector.broadcast %cst_20 : f32 to vector<8x32xf32>
      %23 = arith.mulf %19, %22 : vector<8x32xf32>
      %24 = math.erf %23 : vector<8x32xf32>
      %cst_21 = arith.constant 1.000000e+00 : f32
      %25 = vector.broadcast %cst_21 : f32 to vector<8x32xf32>
      %26 = arith.addf %25, %24 : vector<8x32xf32>
      %27 = arith.mulf %21, %26 : vector<8x32xf32>
      %c0_22 = arith.constant 0 : index
      %c0_23 = arith.constant 0 : index
      %28 = vector.load %arg7[%c0_22, %c0_23] : memref<32x128xf32, #tpu.memory_space<vmem>>, vector<32x128xf32>
      %cst_24 = arith.constant dense<0.000000e+00> : vector<8x128xf32>
      %29 = tpu.matmul %27, %28, %cst_24 {dimension_numbers = #tpu.dot_dimension_numbers<[1], [0], [0], [1], [0, 0, 1, 1], [], []>} : vector<8x32xf32>, vector<32x128xf32>, vector<8x128xf32> -> vector<8x128xf32>
      %c0_25 = arith.constant 0 : index
      %c0_26 = arith.constant 0 : index
      %30 = vector.load %arg8[%c0_25, %c0_26] : memref<1x128xf32, #tpu.memory_space<vmem>>, vector<1x128xf32>
      %31 = vector.broadcast %30 : vector<1x128xf32> to vector<8x128xf32>
      %32 = arith.addf %29, %31 : vector<8x128xf32>
      %c0_27 = arith.constant 0 : index
      %c0_28 = arith.constant 0 : index
      %33 = vector.load %arg9[%c0_27, %c0_28] : memref<8x128xf32, #tpu.memory_space<vmem>>, vector<8x128xf32>
      tpu.vector_store %arg9[%c0_27, %c0_28], %32 {strides = array<i32>} : memref<8x128xf32, #tpu.memory_space<vmem>>, vector<8x128xf32>,
    } else {
    }
    return
  }
  func.func @transform_0(%arg0: i32, %arg1: i32) -> (i32, i32) {
    %c0_i32 = arith.constant 0 : i32
    return %arg0, %arg1 : i32, i32
  }
  func.func @transform_1(%arg0: i32, %arg1: i32) -> (i32, i32) {
    %c0_i32 = arith.constant 0 : i32
    return %arg0, %arg1 : i32, i32
  }
  func.func @transform_2(%arg0: i32, %arg1: i32) -> (i32, i32) {
    %c0_i32 = arith.constant 0 : i32
    %c0_i32_0 = arith.constant 0 : i32
    return %arg1, %c0_i32 : i32, i32
  }
  func.func @transform_3(%arg0: i32, %arg1: i32) -> (i32, i32) {
    %c0_i32 = arith.constant 0 : i32
    %c0_i32_0 = arith.constant 0 : i32
    return %arg1, %c0_i32 : i32, i32
  }
  func.func @transform_4(%arg0: i32, %arg1: i32) -> (i32, i32) {
    %c0_i32 = arith.constant 0 : i32
    %c0_i32_0 = arith.constant 0 : i32
    %c0_i32_1 = arith.constant 0 : i32
    return %c0_i32, %c0_i32_0 : i32, i32
  }
  func.func @transform_5(%arg0: i32, %arg1: i32) -> (i32, i32) {
    %c0_i32 = arith.constant 0 : i32
    %c0_i32_0 = arith.constant 0 : i32
    %c0_i32_1 = arith.constant 0 : i32
    return %c0_i32, %c0_i32_0 : i32, i32
  }
  func.func @transform_6(%arg0: i32, %arg1: i32) -> (i32, i32) {
    %c0_i32 = arith.constant 0 : i32
    %c0_i32_0 = arith.constant 0 : i32
    %c0_i32_1 = arith.constant 0 : i32
    return %c0_i32, %c0_i32_0 : i32, i32
  }
  func.func @transform_7(%arg0: i32, %arg1: i32) -> (i32, i32) {
    %c0_i32 = arith.constant 0 : i32
    %c0_i32_0 = arith.constant 0 : i32
    return %arg0, %c0_i32 : i32, i32
  }
}

</mosaic_0001>

<llo_original>
// kernel: tpu_custom_call.1
$region0: #{tpu_custom_call.1}
  #allocation0 [shape = 'u32[]', space=smem, size = 0x4, offset = 0x4, fixed_abs, tag = 'smem constant byte address 0x4 - core index']
  #allocation1 [shape = 'u32[144,128]{1,0:T(1,128)}', space=vmem, size = 0x12000, scoped, tag = 'internal scratch']
  #allocation2 [shape = 'f32[8,32]{1,0:T(8,128)}', space=vmem, size = 0x1000, scoped, tag = 'scratch operand']
  %s0 = inlined_call_operand.hbm [shape: f32[8,32], index: 0, kind: input, shape index: {}]
  %s1 = inlined_call_operand.hbm [shape: f32[8,32], index: 1, kind: input, shape index: {}]
  %s2 = inlined_call_operand.hbm [shape: f32[32,32], index: 2, kind: input, shape index: {}]
  %s3 = inlined_call_operand.hbm [shape: f32[32,32], index: 3, kind: input, shape index: {}]
  %s4 = inlined_call_operand.vmem [shape: f32[1,32], index: 4, kind: input, shape index: {}]
  %s5 = inlined_call_operand.hbm [shape: f32[32,128], index: 5, kind: input, shape index: {}]
  %s6 = inlined_call_operand.vmem [shape: f32[1,128], index: 6, kind: input, shape index: {}]
  %s7 = inlined_call_operand.hbm [shape: f32[8,128], index: 7, kind: output, shape index: {}]
  %s8 = sld [smem:[#allocation0]]
  $region66: #{tpu_custom_call.1} parent=0
    _
  %s10 = ssub.s32 1, %s8
  %s11 = scalar_select 0, %s10, %s8
  $region1: #{tpu_custom_call.1} parent=0
    #allocation3 [shape = 'u8[4096]{0}', space=vmem, size = 0x1000, scoped, tag = 'input window, operand 0, single buffered']
    #allocation4 [shape = 's32[1]{0}', space=sflag, size = 0x4, scoped, tag = 'scoped memory for tpu_custom_call.1']
    #allocation5 [shape = 's32[1]{0}', space=sflag, size = 0x4, scoped, tag = 'scoped memory for tpu_custom_call.1']
    #allocation6 [shape = 'u8[4096]{0}', space=vmem, size = 0x1000, scoped, tag = 'input window, operand 1, single buffered']
    #allocation7 [shape = 's32[1]{0}', space=sflag, size = 0x4, scoped, tag = 'scoped memory for tpu_custom_call.1']
    #allocation8 [shape = 'u8[16384]{0}', space=vmem, size = 0x4000, scoped, tag = 'input window, operand 2, single buffered']
    #allocation9 [shape = 'u8[16384]{0}', space=vmem, size = 0x4000, scoped, tag = 'input window, operand 3, single buffered']
    #allocation10 [shape = 's32[1]{0}', space=sflag, size = 0x4, scoped, tag = 'scoped memory for tpu_custom_call.1']
    #allocation11 [shape = 'u8[16384]{0}', space=vmem, size = 0x4000, scoped, tag = 'input window, operand 5, single buffered']
    #allocation12 [shape = 'u8[4096]{0}', space=vmem, size = 0x1000, scoped, tag = 'output window, operand 0, single buffered']
    %12 = vsyncpa [#allocation4], 0
    %13 = vsyncpa [#allocation7], 0
    %14 = vsyncpa [#allocation10], 0
    %15 = vsyncpa [#allocation5], 0
    // Predicated region
    $region2: #{tpu_custom_call.1} parent=1 // pred_check
      _
    $region3: #{tpu_custom_call.1} parent=1 // pred_check_branch
      %17 = sbr.rel (0) target = $region5
    $region4: #{tpu_custom_call.1} parent=1 // pred_region
      %s19 = ssub.s32 128, 128
      %20 = vsyncadd [#allocation4], %s19
      %s22 = sshll.u32 [#allocation3], 4
      %s23 = int_to_ptr.vmem [resolvable:$true] %s22
      %25 = dma.hbm_to_vmem [thread:$0]  %s0, 128, %s23, [#allocation4]
    $region5: #{tpu_custom_call.1} parent=1 // pred_fallthru
      _
    // Predicated region
    $region6: #{tpu_custom_call.1} parent=1 // pred_check
      _
    $region7: #{tpu_custom_call.1} parent=1 // pred_check_branch
      %27 = sbr.rel (0) target = $region9
    $region8: #{tpu_custom_call.1} parent=1 // pred_region
      %s29 = ssub.s32 128, 128
      %30 = vsyncadd [#allocation7], %s29
      %s32 = sshll.u32 [#allocation6], 4
      %s33 = int_to_ptr.vmem [resolvable:$true] %s32
      %35 = dma.hbm_to_vmem [thread:$0]  %s1, 128, %s33, [#allocation7]
    $region9: #{tpu_custom_call.1} parent=1 // pred_fallthru
      _
    // Predicated region
    $region10: #{tpu_custom_call.1} parent=1 // pred_check
      _
    $region11: #{tpu_custom_call.1} parent=1 // pred_check_branch
      %37 = sbr.rel (0) target = $region13
    $region12: #{tpu_custom_call.1} parent=1 // pred_region
      %s39 = ssub.s32 512, 512
      %40 = vsyncadd [#allocation7], %s39
      %s41 = sshll.u32 [#allocation8], 4
      %s42 = int_to_ptr.vmem [resolvable:$true] %s41
      %47 = dma.hbm_to_vmem [thread:$0]  %s2, 512, %s42, [#allocation7], 128, 128, 8
    $region13: #{tpu_custom_call.1} parent=1 // pred_fallthru
      _
    // Predicated region
    $region14: #{tpu_custom_call.1} parent=1 // pred_check
      _
    $region15: #{tpu_custom_call.1} parent=1 // pred_check_branch
      %49 = sbr.rel (0) target = $region17
    $region16: #{tpu_custom_call.1} parent=1 // pred_region
      %s51 = ssub.s32 512, 512
      %52 = vsyncadd [#allocation10], %s51
      %s53 = sshll.u32 [#allocation9], 4
      %s54 = int_to_ptr.vmem [resolvable:$true] %s53
      %59 = dma.hbm_to_vmem [thread:$0]  %s3, 512, %s54, [#allocation10], 128, 128, 8
    $region17: #{tpu_custom_call.1} parent=1 // pred_fallthru
      _
    // Predicated region
    $region18: #{tpu_custom_call.1} parent=1 // pred_check
      _
    $region19: #{tpu_custom_call.1} parent=1 // pred_check_branch
      %61 = sbr.rel (0) target = $region21
    $region20: #{tpu_custom_call.1} parent=1 // pred_region
      _
    $region21: #{tpu_custom_call.1} parent=1 // pred_fallthru
      _
    // Predicated region
    $region22: #{tpu_custom_call.1} parent=1 // pred_check
      _
    $region23: #{tpu_custom_call.1} parent=1 // pred_check_branch
      %63 = sbr.rel (0) target = $region25
    $region24: #{tpu_custom_call.1} parent=1 // pred_region
      %s65 = ssub.s32 512, 512
      %66 = vsyncadd [#allocation10], %s65
      %s67 = sshll.u32 [#allocation11], 4
      %s68 = int_to_ptr.vmem [resolvable:$true] %s67
      %73 = dma.hbm_to_vmem [thread:$0]  %s5, 512, %s68, [#allocation10], 128, 128, 8
    $region25: #{tpu_custom_call.1} parent=1 // pred_fallthru
      _
    // Predicated region
    $region26: #{tpu_custom_call.1} parent=1 // pred_check
      _
    $region27: #{tpu_custom_call.1} parent=1 // pred_check_branch
      %75 = sbr.rel (0) target = $region29
    $region28: #{tpu_custom_call.1} parent=1 // pred_region
      _
    $region29: #{tpu_custom_call.1} parent=1 // pred_fallthru
      _
    // Predicated region
    $region30: #{tpu_custom_call.1} parent=1 // pred_check
      _
    $region31: #{tpu_custom_call.1} parent=1 // pred_check_branch
      %77 = sbr.rel (0) target = $region33
    $region32: #{tpu_custom_call.1} parent=1 // pred_region
      %78 = dma.done [#allocation4], 128
    $region33: #{tpu_custom_call.1} parent=1 // pred_fallthru
      _
    // Predicated region
    $region34: #{tpu_custom_call.1} parent=1 // pred_check
      _
    $region35: #{tpu_custom_call.1} parent=1 // pred_check_branch
      %80 = sbr.rel (0) target = $region37
    $region36: #{tpu_custom_call.1} parent=1 // pred_region
      %81 = dma.done [#allocation7], 128
    $region37: #{tpu_custom_call.1} parent=1 // pred_fallthru
      _
    // Predicated region
    $region38: #{tpu_custom_call.1} parent=1 // pred_check
      _
    $region39: #{tpu_custom_call.1} parent=1 // pred_check_branch
      %83 = sbr.rel (0) target = $region41
    $region40: #{tpu_custom_call.1} parent=1 // pred_region
      %84 = dma.done [#allocation7], 512
    $region41: #{tpu_custom_call.1} parent=1 // pred_fallthru
      _
    // Predicated region
    $region42: #{tpu_custom_call.1} parent=1 // pred_check
      _
    $region43: #{tpu_custom_call.1} parent=1 // pred_check_branch
      %86 = sbr.rel (0) target = $region45
    $region44: #{tpu_custom_call.1} parent=1 // pred_region
      %87 = dma.done [#allocation10], 512
    $region45: #{tpu_custom_call.1} parent=1 // pred_fallthru
      _
    // Predicated region
    $region46: #{tpu_custom_call.1} parent=1 // pred_check
      _
    $region47: #{tpu_custom_call.1} parent=1 // pred_check_branch
      %89 = sbr.rel (0) target = $region49
    $region48: #{tpu_custom_call.1} parent=1 // pred_region
      %90 = dma.done [#allocation10], 512
    $region49: #{tpu_custom_call.1} parent=1 // pred_fallthru
      _
    %p91 = scmp.eq.s32.totalorder 0, 0
    // Predicated region
    $region50: #{tpu_custom_call.1} parent=1 // pred_check
      %p92 = pneg %p91
    $region51: #{tpu_custom_call.1} parent=1 // pred_check_branch
      %94 = sbr.rel (%p92) target = $region53
    $region52: #{tpu_custom_call.1} parent=1 // pred_region
      %vm95 = vcmask 261120
      %96 = vst.msk [vmem:[#allocation2] sm:$0xff] %vm95, 0.0
    $region53: #{tpu_custom_call.1} parent=1 // pred_fallthru
      _
    %v97 = vld [vmem:[#allocation2] sm:$0xff]
    %v98 = vld [vmem:[#allocation3] sm:$0xff]
    %v99 = vld [vmem:[#allocation8] sm:$0xff]
    %v100 = vld [vmem:[#allocation8 + $0x8] sm:$0xff]
    %v101 = vld [vmem:[#allocation8 + $0x10] sm:$0xff]
    %v102 = vld [vmem:[#allocation8 + $0x18] sm:$0xff]
    %v103 = vld [vmem:[#allocation6] sm:$0xff]
    %v104 = vld [vmem:[#allocation9] sm:$0xff]
    %v105 = vld [vmem:[#allocation9 + $0x8] sm:$0xff]
    %v106 = vld [vmem:[#allocation9 + $0x10] sm:$0xff]
    %v107 = vld [vmem:[#allocation9 + $0x18] sm:$0xff]
    %vm108 = vcmask 261120
    %v110 = vsel %vm108, %v103, 0
    %112 = vmatprep.subr.mxu0 0.0
    %113 = vmatpush1.msra.mxu0 %v104
    %114 = vmatprep.subr.mxu0 0.0
    %115 = vmatpush1.msra.mxu0 %v105
    %116 = vmatprep.subr.mxu0 0.0
    %117 = vmatpush1.msra.mxu0 %v106
    %118 = vmatprep.subr.mxu0 0.0
    %119 = vmatpush1.msra.mxu0 %v107
    %120 = vmatprep.subr.mxu0 0.0
    %121 = vmatpush1.msra.mxu0 0.0
    %122 = vmatprep.subr.mxu0 0.0
    %123 = vmatpush1.msra.mxu0 0.0
    %124 = vmatprep.subr.mxu0 0.0
    %125 = vmatpush1.msra.mxu0 0.0
    %126 = vmatprep.subr.mxu0 0.0
    %127 = vmatpush1.msra.mxu0 0.0
    %128 = vmatprep.subr.mxu0 0.0
    %129 = vmatpush1.msra.mxu0 0.0
    %130 = vmatprep.subr.mxu0 0.0
    %131 = vmatpush1.msra.mxu0 0.0
    %132 = vmatprep.subr.mxu0 0.0
    %133 = vmatpush1.msra.mxu0 0.0
    %134 = vmatprep.subr.mxu0 0.0
    %135 = vmatpush1.msra.mxu0 0.0
    %136 = vmatprep.subr.mxu0 0.0
    %137 = vmatpush1.msra.mxu0 0.0
    %138 = vmatprep.subr.mxu0 0.0
    %139 = vmatpush1.msra.mxu0 0.0
    %140 = vmatprep.subr.mxu0 0.0
    %141 = vmatpush1.msra.mxu0 0.0
    %142 = vmatprep.subr.mxu0 0.0
    %143 = vmatpush1.msra.mxu0 0.0
    %144 = vmatprep.subr.mxu0 0.0
    %145 = vmatpush1.msra.mxu0 0.0
    %146 = vmatprep.subr.mxu0 0.0
    %147 = vmatpush1.msra.mxu0 0.0
    %148 = vmatprep.subr.mxu0 0.0
    %149 = vmatpush1.msra.mxu0 0.0
    %150 = vmatprep.subr.mxu0 0.0
    %151 = vmatpush1.msra.mxu0 0.0
    %152 = vmatprep.subr.mxu0 0.0
    %153 = vmatpush1.msra.mxu0 0.0
    %154 = vmatprep.subr.mxu0 0.0
    %155 = vmatpush1.msra.mxu0 0.0
    %156 = vmatprep.subr.mxu0 0.0
    %157 = vmatpush1.msra.mxu0 0.0
    %158 = vmatprep.subr.mxu0 0.0
    %159 = vmatpush1.msra.mxu0 0.0
    %160 = vmatprep.subr.mxu0 0.0
    %161 = vmatpush1.msra.mxu0 0.0
    %162 = vmatprep.subr.mxu0 0.0
    %163 = vmatpush1.msra.mxu0 0.0
    %164 = vmatprep.subr.mxu0 0.0
    %165 = vmatpush1.msra.mxu0 0.0
    %166 = vmatprep.subr.mxu0 0.0
    %167 = vmatpush1.msra.mxu0 0.0
    %168 = vmatprep.subr.mxu0 0.0
    %169 = vmatpush1.msra.mxu0 0.0
    %170 = vmatprep.subr.mxu0 0.0
    %171 = vmatpush1.msra.mxu0 0.0
    %172 = vmatprep.subr.mxu0 0.0
    %173 = vmatpush1.msra.mxu0 0.0
    %174 = vmatprep.subr.mxu0 0.0
    %175 = vmatpush1.msra.mxu0 0.0
    %176 = vmatprep.mubr.f32.mxu0 0.0
    %177 = vmatmul.mubr.f32.gmra.mrb[0].mxu0 %v110
    %v178 = vpop.f32.mrb[0].mxu0
    %v179 = vadd.f32 0.0, %v178
    %v180 = vpop.f32.mrb[0].mxu0
    %181 = vdwg.mxu0
    %v183 = vsel %vm108, %v98, 0
    %185 = vmatprep.subr.mxu0 0.0
    %186 = vmatpush1.msra.mxu0 %v99
    %187 = vmatprep.subr.mxu0 0.0
    %188 = vmatpush1.msra.mxu0 %v100
    %189 = vmatprep.subr.mxu0 0.0
    %190 = vmatpush1.msra.mxu0 %v101
    %191 = vmatprep.subr.mxu0 0.0
    %192 = vmatpush1.msra.mxu0 %v102
    %193 = vmatprep.subr.mxu0 0.0
    %194 = vmatpush1.msra.mxu0 0.0
    %195 = vmatprep.subr.mxu0 0.0
    %196 = vmatpush1.msra.mxu0 0.0
    %197 = vmatprep.subr.mxu0 0.0
    %198 = vmatpush1.msra.mxu0 0.0
    %199 = vmatprep.subr.mxu0 0.0
    %200 = vmatpush1.msra.mxu0 0.0
    %201 = vmatprep.subr.mxu0 0.0
    %202 = vmatpush1.msra.mxu0 0.0
    %203 = vmatprep.subr.mxu0 0.0
    %204 = vmatpush1.msra.mxu0 0.0
    %205 = vmatprep.subr.mxu0 0.0
    %206 = vmatpush1.msra.mxu0 0.0
    %207 = vmatprep.subr.mxu0 0.0
    %208 = vmatpush1.msra.mxu0 0.0
    %209 = vmatprep.subr.mxu0 0.0
    %210 = vmatpush1.msra.mxu0 0.0
    %211 = vmatprep.subr.mxu0 0.0
    %212 = vmatpush1.msra.mxu0 0.0
    %213 = vmatprep.subr.mxu0 0.0
    %214 = vmatpush1.msra.mxu0 0.0
    %215 = vmatprep.subr.mxu0 0.0
    %216 = vmatpush1.msra.mxu0 0.0
    %217 = vmatprep.subr.mxu0 0.0
    %218 = vmatpush1.msra.mxu0 0.0
    %219 = vmatprep.subr.mxu0 0.0
    %220 = vmatpush1.msra.mxu0 0.0
    %221 = vmatprep.subr.mxu0 0.0
    %222 = vmatpush1.msra.mxu0 0.0
    %223 = vmatprep.subr.mxu0 0.0
    %224 = vmatpush1.msra.mxu0 0.0
    %225 = vmatprep.subr.mxu0 0.0
    %226 = vmatpush1.msra.mxu0 0.0
    %227 = vmatprep.subr.mxu0 0.0
    %228 = vmatpush1.msra.mxu0 0.0
    %229 = vmatprep.subr.mxu0 0.0
    %230 = vmatpush1.msra.mxu0 0.0
    %231 = vmatprep.subr.mxu0 0.0
    %232 = vmatpush1.msra.mxu0 0.0
    %233 = vmatprep.subr.mxu0 0.0
    %234 = vmatpush1.msra.mxu0 0.0
    %235 = vmatprep.subr.mxu0 0.0
    %236 = vmatpush1.msra.mxu0 0.0
    %237 = vmatprep.subr.mxu0 0.0
    %238 = vmatpush1.msra.mxu0 0.0
    %239 = vmatprep.subr.mxu0 0.0
    %240 = vmatpush1.msra.mxu0 0.0
    %241 = vmatprep.subr.mxu0 0.0
    %242 = vmatpush1.msra.mxu0 0.0
    %243 = vmatprep.subr.mxu0 0.0
    %244 = vmatpush1.msra.mxu0 0.0
    %245 = vmatprep.subr.mxu0 0.0
    %246 = vmatpush1.msra.mxu0 0.0
    %247 = vmatprep.subr.mxu0 0.0
    %248 = vmatpush1.msra.mxu0 0.0
    %249 = vmatprep.mubr.f32.mxu0 0.0
    %250 = vmatmul.mubr.f32.gmra.mrb[0].mxu0 %v183
    %v251 = vpop.f32.mrb[0].mxu0
    %v252 = vadd.f32 %v179, %v251
    %v253 = vpop.f32.mrb[0].mxu0
    %254 = vdwg.mxu0
    %v255 = vadd.f32 %v97, %v252
    %256 = vst.msk [vmem:[#allocation2] sm:$0xff] %vm108, %v255
    // Predicated region
    $region54: #{tpu_custom_call.1} parent=1 // pred_check
      %p257 = pneg %p91
    $region55: #{tpu_custom_call.1} parent=1 // pred_check_branch
      %259 = sbr.rel (%p257) target = $region57
    $region56: #{tpu_custom_call.1} parent=1 // pred_region
      %v260 = vld [vmem:[#allocation2] sm:$0xff]
      %v261 = vld [vmem:[%s4] sm:$0x1]
      %v263 = vlaneseq
      %v264 = vshrl.u32 %v263, 7
      %v265 = vsub.s32 0, %v264
      %v266 = vrot.slane %v261, %v265
      %v268 = vadd.f32 %v260, %v266
      %v269 = vmul.f32 %v268, 0.5
      %v270 = vmul.f32 %v268, 0.70710677
      %v271 = verf.f32.pop %v270
      %v272 = vadd.f32 %v271, 1.0
      %v273 = vmul.f32 %v269, %v272
      %v274 = vld [vmem:[#allocation11] sm:$0xff]
      %v275 = vld [vmem:[#allocation11 + $0x8] sm:$0xff]
      %v276 = vld [vmem:[#allocation11 + $0x10] sm:$0xff]
      %v277 = vld [vmem:[#allocation11 + $0x18] sm:$0xff]
      %v278 = vld [vmem:[%s6] sm:$0x1]
      %v280 = vlaneseq
      %v281 = vshrl.u32 %v280, 7
      %v282 = vsub.s32 0, %v281
      %v283 = vrot.slane %v278, %v282
      %v286 = vsel %vm108, %v273, 0
      %288 = vmatprep.subr.mxu0 0.0
      %289 = vmatpush1.msra.mxu0 %v274
      %290 = vmatprep.subr.mxu0 0.0
      %291 = vmatpush1.msra.mxu0 %v275
      %292 = vmatprep.subr.mxu0 0.0
      %293 = vmatpush1.msra.mxu0 %v276
      %294 = vmatprep.subr.mxu0 0.0
      %295 = vmatpush1.msra.mxu0 %v277
      %296 = vmatprep.subr.mxu0 0.0
      %297 = vmatpush1.msra.mxu0 0.0
      %298 = vmatprep.subr.mxu0 0.0
      %299 = vmatpush1.msra.mxu0 0.0
      %300 = vmatprep.subr.mxu0 0.0
      %301 = vmatpush1.msra.mxu0 0.0
      %302 = vmatprep.subr.mxu0 0.0
      %303 = vmatpush1.msra.mxu0 0.0
      %304 = vmatprep.subr.mxu0 0.0
      %305 = vmatpush1.msra.mxu0 0.0
      %306 = vmatprep.subr.mxu0 0.0
      %307 = vmatpush1.msra.mxu0 0.0
      %308 = vmatprep.subr.mxu0 0.0
      %309 = vmatpush1.msra.mxu0 0.0
      %310 = vmatprep.subr.mxu0 0.0
      %311 = vmatpush1.msra.mxu0 0.0
      %312 = vmatprep.subr.mxu0 0.0
      %313 = vmatpush1.msra.mxu0 0.0
      %314 = vmatprep.subr.mxu0 0.0
      %315 = vmatpush1.msra.mxu0 0.0
      %316 = vmatprep.subr.mxu0 0.0
      %317 = vmatpush1.msra.mxu0 0.0
      %318 = vmatprep.subr.mxu0 0.0
      %319 = vmatpush1.msra.mxu0 0.0
      %320 = vmatprep.subr.mxu0 0.0
      %321 = vmatpush1.msra.mxu0 0.0
      %322 = vmatprep.subr.mxu0 0.0
      %323 = vmatpush1.msra.mxu0 0.0
      %324 = vmatprep.subr.mxu0 0.0
      %325 = vmatpush1.msra.mxu0 0.0
      %326 = vmatprep.subr.mxu0 0.0
      %327 = vmatpush1.msra.mxu0 0.0
      %328 = vmatprep.subr.mxu0 0.0
      %329 = vmatpush1.msra.mxu0 0.0
      %330 = vmatprep.subr.mxu0 0.0
      %331 = vmatpush1.msra.mxu0 0.0
      %332 = vmatprep.subr.mxu0 0.0
      %333 = vmatpush1.msra.mxu0 0.0
      %334 = vmatprep.subr.mxu0 0.0
      %335 = vmatpush1.msra.mxu0 0.0
      %336 = vmatprep.subr.mxu0 0.0
      %337 = vmatpush1.msra.mxu0 0.0
      %338 = vmatprep.subr.mxu0 0.0
      %339 = vmatpush1.msra.mxu0 0.0
      %340 = vmatprep.subr.mxu0 0.0
      %341 = vmatpush1.msra.mxu0 0.0
      %342 = vmatprep.subr.mxu0 0.0
      %343 = vmatpush1.msra.mxu0 0.0
      %344 = vmatprep.subr.mxu0 0.0
      %345 = vmatpush1.msra.mxu0 0.0
      %346 = vmatprep.subr.mxu0 0.0
      %347 = vmatpush1.msra.mxu0 0.0
      %348 = vmatprep.subr.mxu0 0.0
      %349 = vmatpush1.msra.mxu0 0.0
      %350 = vmatprep.subr.mxu0 0.0
      %351 = vmatpush1.msra.mxu0 0.0
      %352 = vmatprep.mubr.f32.mxu0 0.0
      %353 = vmatmul.mubr.f32.gmra.mrb[0].mxu0 %v286
      %v354 = vpop.f32.mrb[0].mxu0
      %v355 = vadd.f32 %v283, %v354
      %v356 = vpop.f32.mrb[0].mxu0
      %357 = vdwg.mxu0
      %358 = vst [vmem:[#allocation12] sm:$0xff] %v355
    $region57: #{tpu_custom_call.1} parent=1 // pred_fallthru
      _
    // Predicated region
    $region58: #{tpu_custom_call.1} parent=1 // pred_check
      _
    $region59: #{tpu_custom_call.1} parent=1 // pred_check_branch
      %360 = sbr.rel (0) target = $region61
    $region60: #{tpu_custom_call.1} parent=1 // pred_region
      %s362 = ssub.s32 128, 128
      %363 = vsyncadd [#allocation5], %s362
      %s365 = sshll.u32 [#allocation12], 4
      %s366 = int_to_ptr.vmem [resolvable:$true] %s365
      %368 = dma.vmem_to_hbm [thread:$0]  %s366, 128, %s7, [#allocation5]
    $region61: #{tpu_custom_call.1} parent=1 // pred_fallthru
      _
    // Predicated region
    $region62: #{tpu_custom_call.1} parent=1 // pred_check
      _
    $region63: #{tpu_custom_call.1} parent=1 // pred_check_branch
      %370 = sbr.rel (0) target = $region65
    $region64: #{tpu_custom_call.1} parent=1 // pred_region
      %371 = dma.done [#allocation5], 128
    $region65: #{tpu_custom_call.1} parent=1 // pred_fallthru
      _
    %372 = vsyncpa [#allocation4], 1
    %373 = vsyncpa [#allocation7], 1
    %374 = vsyncpa [#allocation10], 1
    %375 = vsyncpa [#allocation5], 1

</llo_original>
